<compile_context>
chip_gen: v7x
topology: tpu7x:2x2x1
jax: 0.10.0
libtpu: 0.0.40
codegen_flags: <defaults>
</compile_context>

<pallas_src>
import functools
import math

import jax
import jax.numpy as jnp
from jax.experimental import pallas as pl
from jax.experimental.pallas import tpu as pltpu


_NEG_PENALTY = -100000000.0


def _softmax(x, axis):
    m = jnp.max(x, axis=axis, keepdims=True)
    e = jnp.exp(x - m)
    s = jnp.sum(e, axis=axis, keepdims=True)
    # EUP reciprocal instead of a full VPU divide pass over the attn tensor.
    return e * pl.reciprocal(s, approx=True)


def _luong_kernel(q0_ref, q1_ref, m0_ref, m1_ref, out0_ref, out1_ref, *, scale):
    # Blocks: q0 (bb,S0,D), q1 (bb,S1,D), m0 (bb,S0,1), m1 (bb,1,S1).
    qn0 = q0_ref[...].astype(jnp.float32) * scale
    qn1 = q1_ref[...].astype(jnp.float32) * scale
    # bf16 operands for every MXU contraction; accumulate in f32.
    q0b = qn0.astype(jnp.bfloat16)
    q1b = qn1.astype(jnp.bfloat16)

    # attn[b,i,j] = sum_d qn0[b,i,d] * qn1[b,j,d]   (no explicit transpose)
    attn = jnp.einsum(
        "bid,bjd->bij", q0b, q1b, preferred_element_type=jnp.float32
    )                                                          # (bb,S0,S1) f32

    # Penalty only where BOTH masks are 1.  m0 is pre-scaled by -1e8 (tiny op)
    # so the full attn-sized tensor only sees one fused mul-add pass.
    m0s = m0_ref[...].astype(jnp.float32) * _NEG_PENALTY       # (bb,S0,1)
    m1 = m1_ref[...].astype(jnp.float32)                       # (bb,1,S1)
    attn = attn + m0s * m1

    a_last = _softmax(attn, axis=-1)   # softmax over seq1  -> drives out0
    a_prev = _softmax(attn, axis=-2)   # softmax over seq0  -> drives out1

    out0_ref[...] = jnp.einsum(
        "bij,bjd->bid", a_last.astype(jnp.bfloat16), q1b,
        preferred_element_type=jnp.float32,
    ).astype(out0_ref.dtype)

    # TODO(synk): if a bundle dump shows a vxpose on this sublane-contraction,
    # produce transposed scores with a second (cheap) MXU matmul instead.
    out1_ref[...] = jnp.einsum(
        "bij,bid->bjd", a_prev.astype(jnp.bfloat16), q0b,
        preferred_element_type=jnp.float32,
    ).astype(out1_ref.dtype)


def _pick_batch_block(B, max_block, min_steps):
    """Largest divisor of B that is <= max_block and yields >= min_steps grid
    steps; falls back to the largest divisor <= max_block (always exists: 1)."""
    divisors = [d for d in range(1, B + 1) if B % d == 0]
    good = [d for d in divisors if d <= max_block and B // d >= min_steps]
    if good:
        return max(good)
    ok = [d for d in divisors if d <= max_block]
    return max(ok) if ok else B


def _vmem_bytes_estimate(bb, S0, S1, D, io_bytes):
    # Double-buffered q inputs + outputs, tiny mask blocks, and the f32/bf16
    # attention-sized intermediates (attn + two softmaxes + bf16 copies).
    q_tiles = 2 * 2 * bb * (S0 + S1) * D * io_bytes
    mask_tiles = 2 * 2 * bb * (S0 + S1) * 4
    inter = bb * S0 * S1 * (3 * 4 + 2 * 2)
    return q_tiles + mask_tiles + inter


def luong_attention(querys, lengths, masks, *, hidden_dim,
                    batch_block=8, min_grid_steps=8):
    """Pallas implementation of Luong.forward.

    querys:  [q0 (B,S0,D), q1 (B,S1,D)]
    lengths: unused (matches the reference forward)
    masks:   [m0 (B,S0), m1 (B,S1)]; 1.0 marks positions whose pairings get the
             -1e8 penalty (applied only where BOTH sides are 1).
    returns: [out0 (B,S0,D), out1 (B,S1,D)]
    """
    del lengths  # converted to float but never used in the reference forward
    q0, q1 = querys
    m0, m1 = masks
    B, S0, D = q0.shape
    _, S1, _ = q1.shape
    io_bytes = jnp.dtype(q0.dtype).itemsize

    # Batch block: divisor of B, sized for ~min_grid_steps pipelined steps,
    # then shrunk if the working set would blow past a conservative VMEM budget
    # (keeps v7x's 64 MiB physical / 32 MiB scoped default honest).
    bb = _pick_batch_block(B, batch_block, min_grid_steps)
    vmem_budget = 12 * 1024 * 1024
    while bb > 1 and _vmem_bytes_estimate(bb, S0, S1, D, io_bytes) > vmem_budget:
        bb = max(d for d in range(1, bb) if B % d == 0)
    grid = (B // bb,)

    # Masks shipped as (B,S0,1) / (B,1,S1) so their blocks broadcast directly
    # against the (bb,S0,S1) attention tensor (no in-kernel relayout) and any
    # bb is a legal block (last two dims == full array dims).
    m0f = m0.astype(jnp.float32).reshape(B, S0, 1)
    m1f = m1.astype(jnp.float32).reshape(B, 1, S1)

    kernel = functools.partial(
        _luong_kernel, scale=1.0 / math.sqrt(float(hidden_dim))
    )

    est = _vmem_bytes_estimate(bb, S0, S1, D, io_bytes)
    vmem_limit = int(min(max(2 * est, 32 * 1024 * 1024), 64 * 1024 * 1024))

    cost = pl.CostEstimate(
        flops=6 * B * S0 * S1 * D,                 # three batched matmuls
        transcendentals=2 * B * S0 * S1,           # two exps per attn entry
        bytes_accessed=int(io_bytes * 2 * B * (S0 + S1) * D
                           + 4 * B * (S0 + S1)),
    )

    out0, out1 = pl.pallas_call(
        kernel,
        out_shape=(
            jax.ShapeDtypeStruct((B, S0, D), q0.dtype),
            jax.ShapeDtypeStruct((B, S1, D), q1.dtype),
        ),
        grid=grid,
        in_specs=[
            pl.BlockSpec((bb, S0, D), lambda b: (b, 0, 0)),
            pl.BlockSpec((bb, S1, D), lambda b: (b, 0, 0)),
            pl.BlockSpec((bb, S0, 1), lambda b: (b, 0, 0)),
            pl.BlockSpec((bb, 1, S1), lambda b: (b, 0, 0)),
        ],
        out_specs=(
            pl.BlockSpec((bb, S0, D), lambda b: (b, 0, 0)),
            pl.BlockSpec((bb, S1, D), lambda b: (b, 0, 0)),
        ),
        compiler_params=pltpu.CompilerParams(
            dimension_semantics=("parallel",),
            vmem_limit_bytes=vmem_limit,
        ),
        cost_estimate=cost,
    )(q0, q1, m0f, m1f)

    return [out0, out1]


def _reference(querys, masks, hidden_dim):
    """Pure-JAX (f32) reproduction of the PyTorch forward, for verification."""
    q0, q1 = querys
    m0, m1 = masks
    scale = 1.0 / math.sqrt(float(hidden_dim))
    qn0 = q0 * scale
    qn1 = q1 * scale
    attn = jnp.einsum("bid,bjd->bij", qn0, qn1)
    wmask = m0[:, :, None].astype(jnp.float32) * m1[:, None, :].astype(jnp.float32)
    attn = attn + _NEG_PENALTY * wmask
    a_prev = jax.nn.softmax(attn, axis=-2)
    a_last = jax.nn.softmax(attn, axis=-1)
    out0 = jnp.einsum("bij,bjd->bid", a_last, qn1)
    out1 = jnp.einsum("bji,bjd->bid", a_prev, qn0)
    return [out0, out1]


if __name__ == "__main__":
    key = jax.random.PRNGKey(0)
    k0, k1, k2, k3 = jax.random.split(key, 4)

    # hidden_dim = in_dim = D.
    B, S0, S1, D = 16, 16, 24, 32

    q0 = jax.random.normal(k0, (B, S0, D), dtype=jnp.float32)
    q1 = jax.random.normal(k1, (B, S1, D), dtype=jnp.float32)
    # 0/1 masks (1 marks positions whose pairings get the -1e8 penalty)
    m0 = jax.random.bernoulli(k2, 0.25, (B, S0)).astype(jnp.float32)
    m1 = jax.random.bernoulli(k3, 0.25, (B, S1)).astype(jnp.float32)
    lengths = [jnp.full((B,), S0, jnp.int32), jnp.full((B,), S1, jnp.int32)]

    outs = luong_attention([q0, q1], lengths, [m0, m1], hidden_dim=D)
    outs = [jax.block_until_ready(o) for o in outs]

    refs = _reference([q0, q1], [m0, m1], hidden_dim=D)
    # bf16 MXU operands + approximate reciprocal => relaxed (but tight-for-bf16)
    # tolerances against the f32 reference.
    for o, r in zip(outs, refs):
        assert o.shape == r.shape
        assert jnp.allclose(o, r, atol=2e-2, rtol=2e-2), (
            float(jnp.max(jnp.abs(o - r)))
        )

    print("KERNEL_OK")
</pallas_src>

<mosaic_0001>
module attributes {stable_mosaic.version = 11 : i64} {
  func.func @_luong_kernel(%arg0: i32, %arg1: memref<2x16x32xf32, #tpu.memory_space<vmem>>, %arg2: memref<2x24x32xf32, #tpu.memory_space<vmem>>, %arg3: memref<2x16x1xf32, #tpu.memory_space<vmem>>, %arg4: memref<2x1x24xf32, #tpu.memory_space<vmem>>, %arg5: memref<2x16x32xf32, #tpu.memory_space<vmem>>, %arg6: memref<2x24x32xf32, #tpu.memory_space<vmem>>) attributes {dimension_semantics = [#tpu.dimension_semantics<parallel>], iteration_bounds = array<i64: 8>, scalar_prefetch = 0 : i64, scratch_operands = 0 : i64, tpu.core_type = #tpu.core_type<tc>, window_params = [{transform_indices = @transform_0, window_bounds = array<i64: 2, 16, 32>}, {transform_indices = @transform_1, window_bounds = array<i64: 2, 24, 32>}, {transform_indices = @transform_2, window_bounds = array<i64: 2, 16, 1>}, {transform_indices = @transform_3, window_bounds = array<i64: 2, 1, 24>}, {transform_indices = @transform_4, window_bounds = array<i64: 2, 16, 32>}, {transform_indices = @transform_5, window_bounds = array<i64: 2, 24, 32>}]} {
    %c0 = arith.constant 0 : index
    %c0_0 = arith.constant 0 : index
    %c0_1 = arith.constant 0 : index
    %0 = vector.load %arg1[%c0, %c0_0, %c0_1] : memref<2x16x32xf32, #tpu.memory_space<vmem>>, vector<2x16x32xf32>
    %cst = arith.constant 0.176776692 : f32
    %1 = vector.broadcast %cst : f32 to vector<2x16x32xf32>
    %2 = arith.mulf %0, %1 : vector<2x16x32xf32>
    %c0_2 = arith.constant 0 : index
    %c0_3 = arith.constant 0 : index
    %c0_4 = arith.constant 0 : index
    %3 = vector.load %arg2[%c0_2, %c0_3, %c0_4] : memref<2x24x32xf32, #tpu.memory_space<vmem>>, vector<2x24x32xf32>
    %cst_5 = arith.constant 0.176776692 : f32
    %4 = vector.broadcast %cst_5 : f32 to vector<2x24x32xf32>
    %5 = arith.mulf %3, %4 : vector<2x24x32xf32>
    %6 = arith.truncf %2 : vector<2x16x32xf32> to vector<2x16x32xbf16>
    %7 = arith.truncf %5 : vector<2x24x32xf32> to vector<2x24x32xbf16>
    "tpu.trace_start"() <{level = 10 : i32, message = "bid,bjd->bij"}> : () -> ()
    %cst_6 = arith.constant dense<0.000000e+00> : vector<2x16x24xf32>
    %8 = tpu.matmul %6, %7, %cst_6 {dimension_numbers = #tpu.dot_dimension_numbers<[2], [2], [1], [1], [0, 0, 0, 1, 1, 1], [0], [0]>} : vector<2x16x32xbf16>, vector<2x24x32xbf16>, vector<2x16x24xf32> -> vector<2x16x24xf32>
    "tpu.trace_stop"() : () -> ()
    %c0_7 = arith.constant 0 : index
    %c0_8 = arith.constant 0 : index
    %c0_9 = arith.constant 0 : index
    %9 = vector.load %arg3[%c0_7, %c0_8, %c0_9] : memref<2x16x1xf32, #tpu.memory_space<vmem>>, vector<2x16x1xf32>
    %cst_10 = arith.constant -1.000000e+08 : f32
    %10 = vector.broadcast %cst_10 : f32 to vector<2x16x1xf32>
    %11 = arith.mulf %9, %10 : vector<2x16x1xf32>
    %c0_11 = arith.constant 0 : index
    %c0_12 = arith.constant 0 : index
    %c0_13 = arith.constant 0 : index
    %12 = vector.load %arg4[%c0_11, %c0_12, %c0_13] : memref<2x1x24xf32, #tpu.memory_space<vmem>>, vector<2x1x24xf32>
    %13 = vector.broadcast %11 : vector<2x16x1xf32> to vector<2x16x24xf32>
    %14 = vector.broadcast %12 : vector<2x1x24xf32> to vector<2x16x24xf32>
    %15 = arith.mulf %13, %14 : vector<2x16x24xf32>
    %16 = arith.addf %8, %15 : vector<2x16x24xf32>
    %cst_14 = arith.constant dense<0xFF800000> : vector<2x16xf32>
    %17 = vector.multi_reduction <maximumf>, %16, %cst_14 [2] : vector<2x16x24xf32> to vector<2x16xf32>
    %18 = vector.shape_cast %17 : vector<2x16xf32> to vector<2x16x1xf32>
    %19 = vector.broadcast %18 : vector<2x16x1xf32> to vector<2x16x24xf32>
    %20 = arith.subf %16, %19 : vector<2x16x24xf32>
    %21 = math.exp %20 : vector<2x16x24xf32>
    %cst_15 = arith.constant dense<0.000000e+00> : vector<2x16xf32>
    %22 = vector.multi_reduction <add>, %21, %cst_15 [2] : vector<2x16x24xf32> to vector<2x16xf32>
    %23 = vector.shape_cast %22 : vector<2x16xf32> to vector<2x16x1xf32>
    %24 = tpu.reciprocal %23 {approx = true} : vector<2x16x1xf32> -> vector<2x16x1xf32>
    %25 = vector.broadcast %24 : vector<2x16x1xf32> to vector<2x16x24xf32>
    %26 = arith.mulf %21, %25 : vector<2x16x24xf32>
    %cst_16 = arith.constant dense<0xFF800000> : vector<2x24xf32>
    %27 = vector.multi_reduction <maximumf>, %16, %cst_16 [1] : vector<2x16x24xf32> to vector<2x24xf32>
    %28 = vector.shape_cast %27 : vector<2x24xf32> to vector<2x1x24xf32>
    %29 = vector.broadcast %28 : vector<2x1x24xf32> to vector<2x16x24xf32>
    %30 = arith.subf %16, %29 : vector<2x16x24xf32>
    %31 = math.exp %30 : vector<2x16x24xf32>
    %cst_17 = arith.constant dense<0.000000e+00> : vector<2x24xf32>
    %32 = vector.multi_reduction <add>, %31, %cst_17 [1] : vector<2x16x24xf32> to vector<2x24xf32>
    %33 = vector.shape_cast %32 : vector<2x24xf32> to vector<2x1x24xf32>
    %34 = tpu.reciprocal %33 {approx = true} : vector<2x1x24xf32> -> vector<2x1x24xf32>
    %35 = vector.broadcast %34 : vector<2x1x24xf32> to vector<2x16x24xf32>
    %36 = arith.mulf %31, %35 : vector<2x16x24xf32>
    %37 = arith.truncf %26 : vector<2x16x24xf32> to vector<2x16x24xbf16>
    "tpu.trace_start"() <{level = 10 : i32, message = "bij,bjd->bid"}> : () -> ()
    %cst_18 = arith.constant dense<0.000000e+00> : vector<2x16x32xf32>
    %38 = tpu.matmul %37, %7, %cst_18 {dimension_numbers = #tpu.dot_dimension_numbers<[2], [1], [1], [2], [0, 0, 0, 1, 1, 2], [0], [0]>} : vector<2x16x24xbf16>, vector<2x24x32xbf16>, vector<2x16x32xf32> -> vector<2x16x32xf32>
    "tpu.trace_stop"() : () -> ()
    %c0_19 = arith.constant 0 : index
    %c0_20 = arith.constant 0 : index
    %c0_21 = arith.constant 0 : index
    %39 = vector.load %arg5[%c0_19, %c0_20, %c0_21] : memref<2x16x32xf32, #tpu.memory_space<vmem>>, vector<2x16x32xf32>
    tpu.vector_store %arg5[%c0_19, %c0_20, %c0_21], %38 {strides = array<i32>} : memref<2x16x32xf32, #tpu.memory_space<vmem>>, vector<2x16x32xf32>,
    %40 = arith.truncf %36 : vector<2x16x24xf32> to vector<2x16x24xbf16>
    "tpu.trace_start"() <{level = 10 : i32, message = "bij,bid->bjd"}> : () -> ()
    %cst_22 = arith.constant dense<0.000000e+00> : vector<2x24x32xf32>
    %41 = tpu.matmul %40, %6, %cst_22 {dimension_numbers = #tpu.dot_dimension_numbers<[1], [1], [2], [2], [0, 0, 0, 2, 1, 2], [0], [0]>} : vector<2x16x24xbf16>, vector<2x16x32xbf16>, vector<2x24x32xf32> -> vector<2x24x32xf32>
    "tpu.trace_stop"() : () -> ()
    %c0_23 = arith.constant 0 : index
    %c0_24 = arith.constant 0 : index
    %c0_25 = arith.constant 0 : index
    %42 = vector.load %arg6[%c0_23, %c0_24, %c0_25] : memref<2x24x32xf32, #tpu.memory_space<vmem>>, vector<2x24x32xf32>
    tpu.vector_store %arg6[%c0_23, %c0_24, %c0_25], %41 {strides = array<i32>} : memref<2x24x32xf32, #tpu.memory_space<vmem>>, vector<2x24x32xf32>,
    return
  }
  func.func @transform_0(%arg0: i32) -> (i32, i32, i32) {
    %c0_i32 = arith.constant 0 : i32
    %c0_i32_0 = arith.constant 0 : i32
    %c0_i32_1 = arith.constant 0 : i32
    return %arg0, %c0_i32, %c0_i32_0 : i32, i32, i32
  }
  func.func @transform_1(%arg0: i32) -> (i32, i32, i32) {
    %c0_i32 = arith.constant 0 : i32
    %c0_i32_0 = arith.constant 0 : i32
    %c0_i32_1 = arith.constant 0 : i32
    return %arg0, %c0_i32, %c0_i32_0 : i32, i32, i32
  }
  func.func @transform_2(%arg0: i32) -> (i32, i32, i32) {
    %c0_i32 = arith.constant 0 : i32
    %c0_i32_0 = arith.constant 0 : i32
    %c0_i32_1 = arith.constant 0 : i32
    return %arg0, %c0_i32, %c0_i32_0 : i32, i32, i32
  }
  func.func @transform_3(%arg0: i32) -> (i32, i32, i32) {
    %c0_i32 = arith.constant 0 : i32
    %c0_i32_0 = arith.constant 0 : i32
    %c0_i32_1 = arith.constant 0 : i32
    return %arg0, %c0_i32, %c0_i32_0 : i32, i32, i32
  }
  func.func @transform_4(%arg0: i32) -> (i32, i32, i32) {
    %c0_i32 = arith.constant 0 : i32
    %c0_i32_0 = arith.constant 0 : i32
    %c0_i32_1 = arith.constant 0 : i32
    return %arg0, %c0_i32, %c0_i32_0 : i32, i32, i32
  }
  func.func @transform_5(%arg0: i32) -> (i32, i32, i32) {
    %c0_i32 = arith.constant 0 : i32
    %c0_i32_0 = arith.constant 0 : i32
    %c0_i32_1 = arith.constant 0 : i32
    return %arg0, %c0_i32, %c0_i32_0 : i32, i32, i32
  }
}

</mosaic_0001>

<llo_original>
// kernel: tpu_custom_call.1
$region0: #{tpu_custom_call.1}
  #allocation0 [shape = 'u32[]', space=smem, size = 0x4, offset = 0x4, fixed_abs, tag = 'smem constant byte address 0x4 - core index']
  #allocation1 [shape = 'u32[144,128]{1,0:T(1,128)}', space=vmem, size = 0x12000, scoped, tag = 'internal scratch']
  %s0 = inlined_call_operand.vmem [shape: f32[16,16,32], index: 0, kind: input, shape index: {}]
  %s1 = inlined_call_operand.hbm [shape: f32[16,24,32], index: 1, kind: input, shape index: {}]
  %s2 = inlined_call_operand.vmem [shape: f32[16,16,1], index: 2, kind: input, shape index: {}]
  %s3 = inlined_call_operand.vmem [shape: f32[16,1,24], index: 3, kind: input, shape index: {}]
  %s4 = inlined_call_operand.hbm [shape: f32[16,16,32], index: 4, kind: output, shape index: {0}]
  %s5 = inlined_call_operand.hbm [shape: f32[16,24,32], index: 5, kind: output, shape index: {1}]
  %6 = xla_tuple %s4, %s5
  %s7 = sld [smem:[#allocation0]]
  $region61: #{tpu_custom_call.1} parent=0
    _
  %s9 = ssub.s32 1, %s7
  %s10 = scalar_select 0, %s9, %s7
  $region1: #{tpu_custom_call.1} parent=0
    #allocation2 [shape = 'u8[49152]{0}', space=vmem, size = 0xc000, scoped, tag = 'input window, operand 1']
    #allocation3 [shape = 's32[2]{0}', space=sflag, size = 0x8, scoped, tag = 'scoped memory for tpu_custom_call.1']
    #allocation4 [shape = 's32[2]{0}', space=sflag, size = 0x8, scoped, tag = 'scoped memory for tpu_custom_call.1']
    #allocation5 [shape = 'u8[32768]{0}', space=vmem, size = 0x8000, scoped, tag = 'output window, operand 0']
    #allocation6 [shape = 'u8[49152]{0}', space=vmem, size = 0xc000, scoped, tag = 'output window, operand 1']
    #allocation7 [shape = 's32[2]{0}', space=sflag, size = 0x8, scoped, tag = 'scoped memory for tpu_custom_call.1']
    %11 = vsyncpa [#allocation3], 0
    %s12 = scalar_lea.sflag [#allocation3], 1
    %13 = vsyncpa %s12, 0
    %14 = vsyncpa [#allocation4], 0
    %s15 = scalar_lea.sflag [#allocation4], 1
    %16 = vsyncpa %s15, 0
    %17 = vsyncpa [#allocation7], 0
    %s18 = scalar_lea.sflag [#allocation7], 1
    %19 = vsyncpa %s18, 0
    loop: start=0, step=1, limit=10
    $region2: #{tpu_custom_call.1} parent=1 // loop_pre_header
      _
    $region3: #{tpu_custom_call.1} parent=1 // loop_header
      %s21 = sphi 0, %s25
      %p22 = scmp.ge.s32.totalorder %s21, 10
      %s31 = sphi 0, %s33
      %s34 = sphi 0, %s31
      %s35 = sphi 0, %s34
      %s51 = sphi 0, %s35
      %s57 = sphi 0, %s59
      %s60 = sphi 0, %s57
      %s61 = sphi 0, %s60
      %s77 = sphi 0, %s61
      %s83 = sphi 0, %s85
      %s86 = sphi 0, %s83
      %s87 = sphi 0, %s86
      %s103 = sphi 0, %s87
      %s109 = sphi 0, %s111
      %s112 = sphi 0, %s109
      %s113 = sphi 0, %s112
      %s129 = sphi 0, %s113
      %s135 = sphi 0, %s137
      %s138 = sphi 0, %s135
      %s139 = sphi 0, %s138
      %s155 = sphi 0, %s139
      %s161 = sphi 0, %s163
      %s164 = sphi 0, %s161
      %s165 = sphi 0, %s164
      %s181 = sphi 0, %s165
    $region4: #{tpu_custom_call.1} parent=1 // loop_header_branch
      %24 = sbr.rel (%p22) target = $region8
    $region5: #{tpu_custom_call.1} parent=1 // loop_body
      %s26 = ssub.s32 %s21, 1
      %s27 = ssub.s32 %s21, 2
      %s28 = sadd.s32 %s21, 1
      %s29 = ssub.s32 %s21, %s28
      %p30 = scmp.eq.s32.totalorder %s29, 0
      %s32 = sadd.s32 %s31, 1
      %s33 = scalar_select %p30, %s31, %s32
      %p36 = pneg %p30
      %p37 = scmp.eq.s32.totalorder %s21, 7
      %p38 = por %p36, %p37
      %p39 = scmp.ne.s32.totalorder %s31, %s34
      %p40 = scmp.eq.s32.totalorder %s21, 0
      %p41 = por %p39, %p40
      %p42 = scmp.ne.s32.totalorder %s31, %s34
      %p43 = scmp.eq.s32.totalorder %s26, 7
      %p44 = por %p42, %p43
      %p45 = scmp.ne.s32.totalorder %s34, %s35
      %p46 = scmp.eq.s32.totalorder %s26, 0
      %p47 = por %p45, %p46
      %p48 = scmp.ne.s32.totalorder %s34, %s35
      %p49 = scmp.eq.s32.totalorder %s27, 7
      %p50 = por %p48, %p49
      %p52 = scmp.ne.s32.totalorder %s35, %s51
      %p53 = scmp.eq.s32.totalorder %s27, 0
      %p54 = por %p52, %p53
      %s55 = ssub.s32 %s21, %s28
      %p56 = scmp.eq.s32.totalorder %s55, 0
      %s58 = sadd.s32 %s57, 1
      %s59 = scalar_select %p56, %s57, %s58
      %p62 = pneg %p56
      %p63 = scmp.eq.s32.totalorder %s21, 7
      %p64 = por %p62, %p63
      %p65 = scmp.ne.s32.totalorder %s57, %s60
      %p66 = scmp.eq.s32.totalorder %s21, 0
      %p67 = por %p65, %p66
      %p68 = scmp.ne.s32.totalorder %s57, %s60
      %p69 = scmp.eq.s32.totalorder %s26, 7
      %p70 = por %p68, %p69
      %p71 = scmp.ne.s32.totalorder %s60, %s61
      %p72 = scmp.eq.s32.totalorder %s26, 0
      %p73 = por %p71, %p72
      %p74 = scmp.ne.s32.totalorder %s60, %s61
      %p75 = scmp.eq.s32.totalorder %s27, 7
      %p76 = por %p74, %p75
      %p78 = scmp.ne.s32.totalorder %s61, %s77
      %p79 = scmp.eq.s32.totalorder %s27, 0
      %p80 = por %p78, %p79
      %s81 = ssub.s32 %s21, %s28
      %p82 = scmp.eq.s32.totalorder %s81, 0
      %s84 = sadd.s32 %s83, 1
      %s85 = scalar_select %p82, %s83, %s84
      %p88 = pneg %p82
      %p89 = scmp.eq.s32.totalorder %s21, 7
      %p90 = por %p88, %p89
      %p91 = scmp.ne.s32.totalorder %s83, %s86
      %p92 = scmp.eq.s32.totalorder %s21, 0
      %p93 = por %p91, %p92
      %p94 = scmp.ne.s32.totalorder %s83, %s86
      %p95 = scmp.eq.s32.totalorder %s26, 7
      %p96 = por %p94, %p95
      %p97 = scmp.ne.s32.totalorder %s86, %s87
      %p98 = scmp.eq.s32.totalorder %s26, 0
      %p99 = por %p97, %p98
      %p100 = scmp.ne.s32.totalorder %s86, %s87
      %p101 = scmp.eq.s32.totalorder %s27, 7
      %p102 = por %p100, %p101
      %p104 = scmp.ne.s32.totalorder %s87, %s103
      %p105 = scmp.eq.s32.totalorder %s27, 0
      %p106 = por %p104, %p105
      %s107 = ssub.s32 %s21, %s28
      %p108 = scmp.eq.s32.totalorder %s107, 0
      %s110 = sadd.s32 %s109, 1
      %s111 = scalar_select %p108, %s109, %s110
      %p114 = pneg %p108
      %p115 = scmp.eq.s32.totalorder %s21, 7
      %p116 = por %p114, %p115
      %p117 = scmp.ne.s32.totalorder %s109, %s112
      %p118 = scmp.eq.s32.totalorder %s21, 0
      %p119 = por %p117, %p118
      %p120 = scmp.ne.s32.totalorder %s109, %s112
      %p121 = scmp.eq.s32.totalorder %s26, 7
      %p122 = por %p120, %p121
      %p123 = scmp.ne.s32.totalorder %s112, %s113
      %p124 = scmp.eq.s32.totalorder %s26, 0
      %p125 = por %p123, %p124
      %p126 = scmp.ne.s32.totalorder %s112, %s113
      %p127 = scmp.eq.s32.totalorder %s27, 7
      %p128 = por %p126, %p127
      %p130 = scmp.ne.s32.totalorder %s113, %s129
      %p131 = scmp.eq.s32.totalorder %s27, 0
      %p132 = por %p130, %p131
      %s133 = ssub.s32 %s21, %s28
      %p134 = scmp.eq.s32.totalorder %s133, 0
      %s136 = sadd.s32 %s135, 1
      %s137 = scalar_select %p134, %s135, %s136
      %p140 = pneg %p134
      %p141 = scmp.eq.s32.totalorder %s21, 7
      %p142 = por %p140, %p141
      %p143 = scmp.ne.s32.totalorder %s135, %s138
      %p144 = scmp.eq.s32.totalorder %s21, 0
      %p145 = por %p143, %p144
      %p146 = scmp.ne.s32.totalorder %s135, %s138
      %p147 = scmp.eq.s32.totalorder %s26, 7
      %p148 = por %p146, %p147
      %p149 = scmp.ne.s32.totalorder %s138, %s139
      %p150 = scmp.eq.s32.totalorder %s26, 0
      %p151 = por %p149, %p150
      %p152 = scmp.ne.s32.totalorder %s138, %s139
      %p153 = scmp.eq.s32.totalorder %s27, 7
      %p154 = por %p152, %p153
      %p156 = scmp.ne.s32.totalorder %s139, %s155
      %p157 = scmp.eq.s32.totalorder %s27, 0
      %p158 = por %p156, %p157
      %s159 = ssub.s32 %s21, %s28
      %p160 = scmp.eq.s32.totalorder %s159, 0
      %s162 = sadd.s32 %s161, 1
      %s163 = scalar_select %p160, %s161, %s162
      %p166 = pneg %p160
      %p167 = scmp.eq.s32.totalorder %s21, 7
      %p168 = por %p166, %p167
      %p169 = scmp.ne.s32.totalorder %s161, %s164
      %p170 = scmp.eq.s32.totalorder %s21, 0
      %p171 = por %p169, %p170
      %p172 = scmp.ne.s32.totalorder %s161, %s164
      %p173 = scmp.eq.s32.totalorder %s26, 7
      %p174 = por %p172, %p173
      %p175 = scmp.ne.s32.totalorder %s164, %s165
      %p176 = scmp.eq.s32.totalorder %s26, 0
      %p177 = por %p175, %p176
      %p178 = scmp.ne.s32.totalorder %s164, %s165
      %p179 = scmp.eq.s32.totalorder %s27, 7
      %p180 = por %p178, %p179
      %p182 = scmp.ne.s32.totalorder %s165, %s181
      %p183 = scmp.eq.s32.totalorder %s27, 0
      %p184 = por %p182, %p183
      %p185 = scmp.le.s32.totalorder 1, %s21
      %p186 = scmp.lt.s32.totalorder %s21, 9
      %p187 = pnand %p185, %p186
      %p188 = pneg %p187
      // Predicated region
      $region9: #{tpu_custom_call.1} parent=5 // pred_check
        _
      $region10: #{tpu_custom_call.1} parent=5 // pred_check_branch
        %190 = sbr.rel (%p187) target = $region12
      $region11: #{tpu_custom_call.1} parent=5 // pred_region
        %s191 = ssub.s32 %s21, 1
      $region12: #{tpu_custom_call.1} parent=5 // pred_fallthru
        _
      %p192 = scmp.lt.s32.totalorder %s21, 8
      // Predicated region
      $region13: #{tpu_custom_call.1} parent=5 // pred_check
        %p193 = pneg %p192
      $region14: #{tpu_custom_call.1} parent=5 // pred_check_branch
        %195 = sbr.rel (%p193) target = $region16
      $region15: #{tpu_custom_call.1} parent=5 // pred_region
        // Predicated region
        $region17: #{tpu_custom_call.1} parent=15 // pred_check
          %p196 = pneg %p41
        $region18: #{tpu_custom_call.1} parent=15 // pred_check_branch
          %198 = sbr.rel (%p196) target = $region20
        $region19: #{tpu_custom_call.1} parent=15 // pred_region
          %s199 = smul.u32 2, %s21
          %p200 = scmp.lt.s32.totalorder %s199, 15
          %s201 = scalar_select %p200, %s199, 15
          %s202 = smul.addr %s201, 2
          %s203 = smul.addr %s202, 8
          %s204 = scalar_lea.vmem %s0, %s203
          %s205 = smul.u32 2, %s21
        $region20: #{tpu_custom_call.1} parent=15 // pred_fallthru
          _
        // Predicated region
        $region21: #{tpu_custom_call.1} parent=15 // pred_check
          %p206 = pneg %p67
        $region22: #{tpu_custom_call.1} parent=15 // pred_check_branch
          %208 = sbr.rel (%p206) target = $region24
        $region23: #{tpu_custom_call.1} parent=15 // pred_region
          %s209 = sand.u32 %s57, 1
          %s210 = scalar_lea.sflag [#allocation3], %s209
          %s211 = sand.u32 %s57, 1
          %s212 = smul.addr %s211, 48
          %s213 = scalar_lea.vmem [#allocation2], %s212
          %s214 = smul.u32 2, %s21
          %s216 = ssub.s32 768, 768
          %217 = vsyncadd %s210, %s216
          %s218 = smul.addr %s214, 3
          %s219 = smul.addr %s218, 128
          %s220 = scalar_lea.hbm %s1, %s219
          %s221 = sshll.u32 %s213, 4
          %s222 = int_to_ptr.vmem [resolvable:$true] %s221
          %227 = dma.hbm_to_vmem [thread:$0]  %s220, 768, %s222, %s210, 128, 128, 8
        $region24: #{tpu_custom_call.1} parent=15 // pred_fallthru
          _
        // Predicated region
        $region25: #{tpu_custom_call.1} parent=15 // pred_check
          %p228 = pneg %p93
        $region26: #{tpu_custom_call.1} parent=15 // pred_check_branch
          %230 = sbr.rel (%p228) target = $region28
        $region27: #{tpu_custom_call.1} parent=15 // pred_region
          %s231 = smul.u32 2, %s21
          %p232 = scmp.lt.s32.totalorder %s231, 15
          %s233 = scalar_select %p232, %s231, 15
          %s234 = smul.addr %s233, 2
          %s235 = smul.addr %s234, 8
          %s236 = scalar_lea.vmem %s2, %s235
          %s237 = smul.u32 2, %s21
        $region28: #{tpu_custom_call.1} parent=15 // pred_fallthru
          _
        // Predicated region
        $region29: #{tpu_custom_call.1} parent=15 // pred_check
          %p238 = pneg %p119
        $region30: #{tpu_custom_call.1} parent=15 // pred_check_branch
          %240 = sbr.rel (%p238) target = $region32
        $region31: #{tpu_custom_call.1} parent=15 // pred_region
          %s241 = smul.u32 2, %s21
          %p242 = scmp.lt.s32.totalorder %s241, 15
          %s243 = scalar_select %p242, %s241, 15
          %s244 = scalar_lea.vmem %s3, %s243
          %s245 = smul.u32 2, %s21
        $region32: #{tpu_custom_call.1} parent=15 // pred_fallthru
          _
      $region16: #{tpu_custom_call.1} parent=5 // pred_fallthru
        _
      %p246 = scmp.le.s32.totalorder 1, %s21
      %p247 = scmp.lt.s32.totalorder %s21, 9
      %p248 = pnand %p246, %p247
      %p249 = pneg %p248
      // Predicated region
      $region33: #{tpu_custom_call.1} parent=5 // pred_check
        _
      $region34: #{tpu_custom_call.1} parent=5 // pred_check_branch
        %251 = sbr.rel (%p248) target = $region36
      $region35: #{tpu_custom_call.1} parent=5 // pred_region
        %s252 = ssub.s32 %s21, 1
        %s253 = sand.u32 %s60, 1
        %s254 = scalar_lea.sflag [#allocation3], %s253
        %s255 = sand.u32 %s60, 1
        %s256 = smul.addr %s255, 48
        %s257 = scalar_lea.vmem [#allocation2], %s256
        // Predicated region
        $region37: #{tpu_custom_call.1} parent=35 // pred_check
          %p258 = pneg %p73
        $region38: #{tpu_custom_call.1} parent=35 // pred_check_branch
          %260 = sbr.rel (%p258) target = $region40
        $region39: #{tpu_custom_call.1} parent=35 // pred_region
          %261 = dma.done %s254, 768
        $region40: #{tpu_custom_call.1} parent=35 // pred_fallthru
          _
        %s262 = smul.u32 2, %s26
        %p263 = scmp.lt.s32.totalorder %s262, 15
        %s264 = scalar_select %p263, %s262, 15
        %s265 = smul.addr %s264, 2
        %s266 = smul.addr %s265, 8
        %s267 = scalar_lea.vmem %s0, %s266
        %p268 = pneg %p47
        %p269 = pneg %p44
        %s270 = sand.u32 %s60, 1
        %s271 = scalar_lea.sflag [#allocation3], %s270
        %s272 = sand.u32 %s60, 1
        %s273 = smul.addr %s272, 48
        %s274 = scalar_lea.vmem [#allocation2], %s273
        %p275 = pneg %p73
        %p276 = pneg %p70
        %s277 = smul.u32 2, %s26
        %p278 = scmp.lt.s32.totalorder %s277, 15
        %s279 = scalar_select %p278, %s277, 15
        %s280 = smul.addr %s279, 2
        %s281 = smul.addr %s280, 8
        %s282 = scalar_lea.vmem %s2, %s281
        %p283 = pneg %p99
        %p284 = pneg %p96
        %s285 = smul.u32 2, %s26
        %p286 = scmp.lt.s32.totalorder %s285, 15
        %s287 = scalar_select %p286, %s285, 15
        %s288 = scalar_lea.vmem %s3, %s287
        %p289 = pneg %p125
        %p290 = pneg %p122
        %p291 = pneg %p151
        %p292 = pneg %p148
        %s293 = sand.u32 %s138, 1
        %s294 = scalar_lea.sflag [#allocation4], %s293
        %s295 = sand.u32 %s138, 1
        %s296 = smul.addr %s295, 32
        %s297 = scalar_lea.vmem [#allocation5], %s296
        %p298 = pneg %p177
        %p299 = pneg %p174
        %s300 = sand.u32 %s164, 1
        %s301 = scalar_lea.sflag [#allocation7], %s300
        %s302 = sand.u32 %s164, 1
        %s303 = smul.addr %s302, 48
        %s304 = scalar_lea.vmem [#allocation6], %s303
        %s305 = smul.u32 2, %s26
        %p306 = scmp.lt.s32.totalorder %s305, 15
        %s307 = scalar_select %p306, %s305, 15
        %s308 = smul.addr %s307, 2
        %s309 = smul.addr %s308, 8
        %s310 = scalar_lea.vmem %s0, %s309
        %s311 = smul.u32 2, %s26
        %s312 = smul.u32 2, %s26
        %s313 = smul.u32 2, %s26
        %p314 = scmp.lt.s32.totalorder %s313, 15
        %s315 = scalar_select %p314, %s313, 15
        %s316 = smul.addr %s315, 2
        %s317 = smul.addr %s316, 8
        %s318 = scalar_lea.vmem %s2, %s317
        %s319 = smul.u32 2, %s26
        %s320 = smul.u32 2, %s26
        %p321 = scmp.lt.s32.totalorder %s320, 15
        %s322 = scalar_select %p321, %s320, 15
        %s323 = scalar_lea.vmem %s3, %s322
        %s324 = smul.u32 2, %s26
        %s325 = smul.u32 2, %s26
        %s326 = smul.u32 2, %s26
        %v328 = vld [vmem:[%s310] sm:$0xff]
        %v329 = vld [vmem:[%s310 + $0x8] sm:$0xff]
        %v330 = vld [vmem:[%s310 + $0x10] sm:$0xff]
        %v331 = vld [vmem:[%s310 + $0x18] sm:$0xff]
        %v332 = vmul.f32 %v328, 0.17677669
        %v333 = vmul.f32 %v329, 0.17677669
        %v334 = vmul.f32 %v330, 0.17677669
        %v335 = vmul.f32 %v331, 0.17677669
        %v336 = vld [vmem:[%s257] sm:$0xff]
        %v337 = vld [vmem:[%s257 + $0x8] sm:$0xff]
        %v338 = vld [vmem:[%s257 + $0x10] sm:$0xff]
        %v339 = vld [vmem:[%s257 + $0x18] sm:$0xff]
        %v340 = vld [vmem:[%s257 + $0x20] sm:$0xff]
        %v341 = vld [vmem:[%s257 + $0x28] sm:$0xff]
        %v342 = vmul.f32 %v336, 0.17677669
        %v343 = vmul.f32 %v337, 0.17677669
        %v344 = vmul.f32 %v338, 0.17677669
        %v345 = vmul.f32 %v339, 0.17677669
        %v346 = vmul.f32 %v340, 0.17677669
        %v347 = vmul.f32 %v341, 0.17677669
        %v348 = vpack.c.bf16 %v333, %v332
        %v349 = vpack.c.bf16 %v335, %v334
        %v350 = vpack.c.bf16 %v343, %v342
        %v351 = vpack.c.bf16 %v344, %v344
        %v352 = vpack.c.bf16 %v346, %v345
        %v353 = vpack.c.bf16 %v347, %v347
        %v354 = vld [vmem:[%s318] sm:$0xff]
        %v355 = vld [vmem:[%s318 + $0x8] sm:$0xff]
        %v356 = vld [vmem:[%s318 + $0x10] sm:$0xff]
        %v357 = vld [vmem:[%s318 + $0x18] sm:$0xff]
        %v358 = vmul.f32 %v354, -1e+08
        %v359 = vmul.f32 %v355, -1e+08
        %v360 = vmul.f32 %v356, -1e+08
        %v361 = vmul.f32 %v357, -1e+08
        %v362 = vld [vmem:[%s323] sm:$0x1]
        %v363 = vld [vmem:[%s323 + $0x1] sm:$0x1]
        %365 = vset.pattern.permute.xlu0 0
        %366 = vperm.xlu0 %365, %v358
        %v367 = vpop.permute.xlu0 %366
        %370 = vset.pattern.permute.xlu0 0
        %371 = vperm.xlu0 %370, %v359
        %v372 = vpop.permute.xlu0 %371
        %375 = vset.pattern.permute.xlu0 0
        %376 = vperm.xlu0 %375, %v360
        %v377 = vpop.permute.xlu0 %376
        %380 = vset.pattern.permute.xlu0 0
        %381 = vperm.xlu0 %380, %v361
        %v382 = vpop.permute.xlu0 %381
        %v386 = vlaneseq
        %v387 = vshrl.u32 %v386, 7
        %v388 = vsub.s32 0, %v387
        %v389 = vrot.slane %v362, %v388
        %v390 = vlaneseq
        %v391 = vshrl.u32 %v390, 7
        %v392 = vsub.s32 0, %v391
        %v393 = vrot.slane %v363, %v392
        %v396 = vmul.f32 %v367, %v389
        %v397 = vmul.f32 %v372, %v389
        %v398 = vmul.f32 %v377, %v393
        %v399 = vmul.f32 %v382, %v393
        %vm400 = vcmask 261120
        %v402 = vsel %vm400, %v348, 0
        %v405 = vsel %vm400, %v350, 0
        %v408 = vsel %vm400, %v351, 0
        %410 = vmatprep.subr.bf16.mxu0 0
        %411 = vmatpush1.bf16.xpose.msra.mxu0 %v405
        %412 = vmatprep.subr.bf16.mxu0 0
        %413 = vmatpush1.bf16.xpose.msra.mxu0 %v408
        %414 = vmatprep.subr.bf16.mxu0 0
        %415 = vmatpush1.bf16.xpose.msra.mxu0 0
        %416 = vmatprep.subr.bf16.mxu0 0
        %417 = vmatpush1.bf16.xpose.msra.mxu0 0
        %418 = vmatprep.subr.bf16.mxu0 0
        %419 = vmatpush1.bf16.xpose.msra.mxu0 0
        %420 = vmatprep.subr.bf16.mxu0 0
        %421 = vmatpush1.bf16.xpose.msra.mxu0 0
        %422 = vmatprep.subr.bf16.mxu0 0
        %423 = vmatpush1.bf16.xpose.msra.mxu0 0
        %424 = vmatprep.subr.bf16.mxu0 0
        %425 = vmatpush1.bf16.xpose.msra.mxu0 0
        %426 = vmatprep.subr.bf16.mxu0 0
        %427 = vmatpush1.bf16.xpose.msra.mxu0 0
        %428 = vmatprep.subr.bf16.mxu0 0
        %429 = vmatpush1.bf16.xpose.msra.mxu0 0
        %430 = vmatprep.subr.bf16.mxu0 0
        %431 = vmatpush1.bf16.xpose.msra.mxu0 0
        %432 = vmatprep.subr.bf16.mxu0 0
        %433 = vmatpush1.bf16.xpose.msra.mxu0 0
        %434 = vmatprep.subr.bf16.mxu0 0
        %435 = vmatpush1.bf16.xpose.msra.mxu0 0
        %436 = vmatprep.subr.bf16.mxu0 0
        %437 = vmatpush1.bf16.xpose.msra.mxu0 0
        %438 = vmatprep.subr.bf16.mxu0 0
        %439 = vmatpush1.bf16.xpose.msra.mxu0 0
        %440 = vmatprep.subr.bf16.mxu0 0
        %441 = vmatpush1.bf16.xpose.msra.mxu0 0
        %442 = vmatprep.mubr.bf16.mxu0 0
        %443 = vmatmul.mubr.bf16.gmra.mrb[0].mxu0 %v402
        %v444 = vpop.f32.mrb[0].mxu0
        %v445 = vadd.f32 %v396, %v444
        %v446 = vpop.f32.mrb[0].mxu0
        %v447 = vpop.f32.mrb[0].mxu0
        %v448 = vadd.f32 %v397, %v447
        %v449 = vpop.f32.mrb[0].mxu0
        %450 = vdwg.mxu0
        %v452 = vsel %vm400, %v349, 0
        %v455 = vsel %vm400, %v352, 0
        %v458 = vsel %vm400, %v353, 0
        %460 = vmatprep.subr.bf16.mxu0 0
        %461 = vmatpush1.bf16.xpose.msra.mxu0 %v455
        %462 = vmatprep.subr.bf16.mxu0 0
        %463 = vmatpush1.bf16.xpose.msra.mxu0 %v458
        %464 = vmatprep.subr.bf16.mxu0 0
        %465 = vmatpush1.bf16.xpose.msra.mxu0 0
        %466 = vmatprep.subr.bf16.mxu0 0
        %467 = vmatpush1.bf16.xpose.msra.mxu0 0
        %468 = vmatprep.subr.bf16.mxu0 0
        %469 = vmatpush1.bf16.xpose.msra.mxu0 0
        %470 = vmatprep.subr.bf16.mxu0 0
        %471 = vmatpush1.bf16.xpose.msra.mxu0 0
        %472 = vmatprep.subr.bf16.mxu0 0
        %473 = vmatpush1.bf16.xpose.msra.mxu0 0
        %474 = vmatprep.subr.bf16.mxu0 0
        %475 = vmatpush1.bf16.xpose.msra.mxu0 0
        %476 = vmatprep.subr.bf16.mxu0 0
        %477 = vmatpush1.bf16.xpose.msra.mxu0 0
        %478 = vmatprep.subr.bf16.mxu0 0
        %479 = vmatpush1.bf16.xpose.msra.mxu0 0
        %480 = vmatprep.subr.bf16.mxu0 0
        %481 = vmatpush1.bf16.xpose.msra.mxu0 0
        %482 = vmatprep.subr.bf16.mxu0 0
        %483 = vmatpush1.bf16.xpose.msra.mxu0 0
        %484 = vmatprep.subr.bf16.mxu0 0
        %485 = vmatpush1.bf16.xpose.msra.mxu0 0
        %486 = vmatprep.subr.bf16.mxu0 0
        %487 = vmatpush1.bf16.xpose.msra.mxu0 0
        %488 = vmatprep.subr.bf16.mxu0 0
        %489 = vmatpush1.bf16.xpose.msra.mxu0 0
        %490 = vmatprep.subr.bf16.mxu0 0
        %491 = vmatpush1.bf16.xpose.msra.mxu0 0
        %492 = vmatprep.mubr.bf16.mxu0 0
        %493 = vmatmul.mubr.bf16.gmra.mrb[0].mxu0 %v452
        %v494 = vpop.f32.mrb[0].mxu0
        %v495 = vadd.f32 %v398, %v494
        %v496 = vpop.f32.mrb[0].mxu0
        %v497 = vpop.f32.mrb[0].mxu0
        %v498 = vadd.f32 %v399, %v497
        %v499 = vpop.f32.mrb[0].mxu0
        %500 = vdwg.mxu0
        %vm501 = vcmask 195584
        %v502 = vsel %vm501, %v445, -inf
        %503 = vmax.xlane.f32.xlu0 %v502
        %v504 = vpop.xlane.xlu0 %503
        %v505 = vsel %vm501, %v448, -inf
        %506 = vmax.xlane.f32.xlu0 %v505
        %v507 = vpop.xlane.xlu0 %506
        %v508 = vsel %vm501, %v495, -inf
        %509 = vmax.xlane.f32.xlu0 %v508
        %v510 = vpop.xlane.xlu0 %509
        %v511 = vsel %vm501, %v498, -inf
        %512 = vmax.xlane.f32.xlu0 %v511
        %v513 = vpop.xlane.xlu0 %512
        %v514 = vsub.f32 %v445, %v504
        %v515 = vsub.f32 %v448, %v507
        %v516 = vsub.f32 %v495, %v510
        %v517 = vsub.f32 %v498, %v513
        %v518 = vmul.f32 %v514, 1.442695
        %v519 = vpow.pop %v518
        %v520 = vmul.f32 %v515, 1.442695
        %v521 = vpow.pop %v520
        %v522 = vmul.f32 %v516, 1.442695
        %v523 = vpow.pop %v522
        %v524 = vmul.f32 %v517, 1.442695
        %v525 = vpow.pop %v524
        %v526 = vsel %vm501, %v519, 0.0
        %527 = vadd.xlane.f32.xlu0 %v526
        %v528 = vpop.xlane.xlu0 %527
        %v529 = vsel %vm501, %v521, 0.0
        %530 = vadd.xlane.f32.xlu0 %v529
        %v531 = vpop.xlane.xlu0 %530
        %v532 = vsel %vm501, %v523, 0.0
        %533 = vadd.xlane.f32.xlu0 %v532
        %v534 = vpop.xlane.xlu0 %533
        %v535 = vsel %vm501, %v525, 0.0
        %536 = vadd.xlane.f32.xlu0 %v535
        %v537 = vpop.xlane.xlu0 %536
        %v538 = vrcp.pop %v528
        %v539 = vrcp.pop %v531
        %v540 = vrcp.pop %v534
        %v541 = vrcp.pop %v537
        %v542 = vmul.f32 %v519, %v538
        %v543 = vmul.f32 %v521, %v539
        %v544 = vmul.f32 %v523, %v540
        %v545 = vmul.f32 %v525, %v541
        %v546 = vmax.f32 %v502, %v505
        %v547 = vrot.slane %v546, 4
        %v548 = vmax.f32 %v546, %v547
        %v549 = vrot.slane %v548, 2
        %v550 = vmax.f32 %v548, %v549
        %v551 = vrot.slane %v550, 1
        %v552 = vmax.f32 %v550, %v551
        %v553 = vmax.f32 %v508, %v511
        %v554 = vrot.slane %v553, 4
        %v555 = vmax.f32 %v553, %v554
        %v556 = vrot.slane %v555, 2
        %v557 = vmax.f32 %v555, %v556
        %v558 = vrot.slane %v557, 1
        %v559 = vmax.f32 %v557, %v558
        %v560 = vsub.f32 %v445, %v552
        %v561 = vsub.f32 %v448, %v552
        %v562 = vsub.f32 %v495, %v559
        %v563 = vsub.f32 %v498, %v559
        %v564 = vmul.f32 %v560, 1.442695
        %v565 = vpow.pop %v564
        %v566 = vmul.f32 %v561, 1.442695
        %v567 = vpow.pop %v566
        %v568 = vmul.f32 %v562, 1.442695
        %v569 = vpow.pop %v568
        %v570 = vmul.f32 %v563, 1.442695
        %v571 = vpow.pop %v570
        %v572 = vsel %vm501, %v565, 0.0
        %v573 = vsel %vm501, %v567, 0.0
        %v574 = vadd.f32 %v572, %v573
        %v575 = vrot.slane %v574, 4
        %v576 = vadd.f32 %v574, %v575
        %v577 = vrot.slane %v576, 2
        %v578 = vadd.f32 %v576, %v577
        %v579 = vrot.slane %v578, 1
        %v580 = vadd.f32 %v578, %v579
        %v581 = vsel %vm501, %v569, 0.0
        %v582 = vsel %vm501, %v571, 0.0
        %v583 = vadd.f32 %v581, %v582
        %v584 = vrot.slane %v583, 4
        %v585 = vadd.f32 %v583, %v584
        %v586 = vrot.slane %v585, 2
        %v587 = vadd.f32 %v585, %v586
        %v588 = vrot.slane %v587, 1
        %v589 = vadd.f32 %v587, %v588
        %v590 = vrcp.pop %v580
        %v591 = vrcp.pop %v589
        %v592 = vmul.f32 %v565, %v590
        %v593 = vmul.f32 %v567, %v590
        %v594 = vmul.f32 %v569, %v591
        %v595 = vmul.f32 %v571, %v591
        %v596 = vpack.c.bf16 %v543, %v542
        %v597 = vpack.c.bf16 %v545, %v544
        %v599 = vsel %vm501, %v596, 0
        %vm601 = vcmask 1043456
        %v602 = vsel %vm601, %v351, 0
        %604 = vmatprep.subr.bf16.mxu0 0
        %605 = vmatpush1.bf16.msra.mxu0 %v350
        %606 = vmatprep.subr.bf16.mxu0 0
        %607 = vmatpush1.bf16.msra.mxu0 %v602
        %608 = vmatprep.subr.bf16.mxu0 0
        %609 = vmatpush1.bf16.msra.mxu0 0
        %610 = vmatprep.subr.bf16.mxu0 0
        %611 = vmatpush1.bf16.msra.mxu0 0
        %612 = vmatprep.subr.bf16.mxu0 0
        %613 = vmatpush1.bf16.msra.mxu0 0
        %614 = vmatprep.subr.bf16.mxu0 0
        %615 = vmatpush1.bf16.msra.mxu0 0
        %616 = vmatprep.subr.bf16.mxu0 0
        %617 = vmatpush1.bf16.msra.mxu0 0
        %618 = vmatprep.subr.bf16.mxu0 0
        %619 = vmatpush1.bf16.msra.mxu0 0
        %620 = vmatprep.subr.bf16.mxu0 0
        %621 = vmatpush1.bf16.msra.mxu0 0
        %622 = vmatprep.subr.bf16.mxu0 0
        %623 = vmatpush1.bf16.msra.mxu0 0
        %624 = vmatprep.subr.bf16.mxu0 0
        %625 = vmatpush1.bf16.msra.mxu0 0
        %626 = vmatprep.subr.bf16.mxu0 0
        %627 = vmatpush1.bf16.msra.mxu0 0
        %628 = vmatprep.subr.bf16.mxu0 0
        %629 = vmatpush1.bf16.msra.mxu0 0
        %630 = vmatprep.subr.bf16.mxu0 0
        %631 = vmatpush1.bf16.msra.mxu0 0
        %632 = vmatprep.subr.bf16.mxu0 0
        %633 = vmatpush1.bf16.msra.mxu0 0
        %634 = vmatprep.subr.bf16.mxu0 0
        %635 = vmatpush1.bf16.msra.mxu0 0
        %636 = vmatprep.mubr.bf16.mxu0 0
        %637 = vmatmul.mubr.bf16.gmra.mrb[0].mxu0 %v599
        %v638 = vpop.f32.mrb[0].mxu0
        %v639 = vadd.f32 0.0, %v638
        %v640 = vpop.f32.mrb[0].mxu0
        %v641 = vpop.f32.mrb[0].mxu0
        %v642 = vadd.f32 0.0, %v641
        %v643 = vpop.f32.mrb[0].mxu0
        %644 = vdwg.mxu0
        %v646 = vsel %vm501, %v597, 0
        %v648 = vsel %vm601, %v353, 0
        %650 = vmatprep.subr.bf16.mxu0 0
        %651 = vmatpush1.bf16.msra.mxu0 %v352
        %652 = vmatprep.subr.bf16.mxu0 0
        %653 = vmatpush1.bf16.msra.mxu0 %v648
        %654 = vmatprep.subr.bf16.mxu0 0
        %655 = vmatpush1.bf16.msra.mxu0 0
        %656 = vmatprep.subr.bf16.mxu0 0
        %657 = vmatpush1.bf16.msra.mxu0 0
        %658 = vmatprep.subr.bf16.mxu0 0
        %659 = vmatpush1.bf16.msra.mxu0 0
        %660 = vmatprep.subr.bf16.mxu0 0
        %661 = vmatpush1.bf16.msra.mxu0 0
        %662 = vmatprep.subr.bf16.mxu0 0
        %663 = vmatpush1.bf16.msra.mxu0 0
        %664 = vmatprep.subr.bf16.mxu0 0
        %665 = vmatpush1.bf16.msra.mxu0 0
        %666 = vmatprep.subr.bf16.mxu0 0
        %667 = vmatpush1.bf16.msra.mxu0 0
        %668 = vmatprep.subr.bf16.mxu0 0
        %669 = vmatpush1.bf16.msra.mxu0 0
        %670 = vmatprep.subr.bf16.mxu0 0
        %671 = vmatpush1.bf16.msra.mxu0 0
        %672 = vmatprep.subr.bf16.mxu0 0
        %673 = vmatpush1.bf16.msra.mxu0 0
        %674 = vmatprep.subr.bf16.mxu0 0
        %675 = vmatpush1.bf16.msra.mxu0 0
        %676 = vmatprep.subr.bf16.mxu0 0
        %677 = vmatpush1.bf16.msra.mxu0 0
        %678 = vmatprep.subr.bf16.mxu0 0
        %679 = vmatpush1.bf16.msra.mxu0 0
        %680 = vmatprep.subr.bf16.mxu0 0
        %681 = vmatpush1.bf16.msra.mxu0 0
        %682 = vmatprep.mubr.bf16.mxu0 0
        %683 = vmatmul.mubr.bf16.gmra.mrb[0].mxu0 %v646
        %v684 = vpop.f32.mrb[0].mxu0
        %v685 = vadd.f32 0.0, %v684
        %v686 = vpop.f32.mrb[0].mxu0
        %v687 = vpop.f32.mrb[0].mxu0
        %v688 = vadd.f32 0.0, %v687
        %v689 = vpop.f32.mrb[0].mxu0
        %690 = vdwg.mxu0
        %691 = vst.msk [vmem:[%s297] sm:$0xff] %vm400, %v639
        %692 = vst.msk [vmem:[%s297 + $0x8] sm:$0xff] %vm400, %v642
        %693 = vst.msk [vmem:[%s297 + $0x10] sm:$0xff] %vm400, %v685
        %694 = vst.msk [vmem:[%s297 + $0x18] sm:$0xff] %vm400, %v688
        %v695 = vpack.c.bf16 %v593, %v592
        %v696 = vpack.c.bf16 %v595, %v594
        %697 = vxpose.xlu0.c.b16.start [1/8] %v695, 128
        %698 = vxpose.xlu0.c.b16.cont [2/8] 0, 128
        %699 = vxpose.xlu0.c.b16.cont [3/8] 0, 128
        %700 = vxpose.xlu0.c.b16.cont [4/8] 0, 128
        %701 = vxpose.xlu0.c.b16.cont [5/8] 0, 128
        %702 = vxpose.xlu0.c.b16.cont [6/8] 0, 128
        %703 = vxpose.xlu0.c.b16.cont [7/8] 0, 128
        %704 = vxpose.xlu0.c.b16.end [8/8] 0, 128
        %v705 = vpop.trf.xlu0
        %v706 = vpop.trf.xlu0
        %v707 = vpop.trf.xlu0
        %v708 = vpop.trf.xlu0
        %v709 = vpop.trf.xlu0
        %v710 = vpop.trf.xlu0
        %v711 = vpop.trf.xlu0
        %v712 = vpop.trf.xlu0
        %vm713 = vcmask 130048
        %v715 = vsel %vm713, %v705, 0
        %v718 = vsel %vm713, %v706, 0
        %720 = vmatprep.subr.bf16.mxu0 0
        %721 = vmatpush1.bf16.msra.mxu0 %v348
        %722 = vmatprep.subr.bf16.mxu0 0
        %723 = vmatpush1.bf16.msra.mxu0 0
        %724 = vmatprep.subr.bf16.mxu0 0
        %725 = vmatpush1.bf16.msra.mxu0 0
        %726 = vmatprep.subr.bf16.mxu0 0
        %727 = vmatpush1.bf16.msra.mxu0 0
        %728 = vmatprep.subr.bf16.mxu0 0
        %729 = vmatpush1.bf16.msra.mxu0 0
        %730 = vmatprep.subr.bf16.mxu0 0
        %731 = vmatpush1.bf16.msra.mxu0 0
        %732 = vmatprep.subr.bf16.mxu0 0
        %733 = vmatpush1.bf16.msra.mxu0 0
        %734 = vmatprep.subr.bf16.mxu0 0
        %735 = vmatpush1.bf16.msra.mxu0 0
        %736 = vmatprep.subr.bf16.mxu0 0
        %737 = vmatpush1.bf16.msra.mxu0 0
        %738 = vmatprep.subr.bf16.mxu0 0
        %739 = vmatpush1.bf16.msra.mxu0 0
        %740 = vmatprep.subr.bf16.mxu0 0
        %741 = vmatpush1.bf16.msra.mxu0 0
        %742 = vmatprep.subr.bf16.mxu0 0
        %743 = vmatpush1.bf16.msra.mxu0 0
        %744 = vmatprep.subr.bf16.mxu0 0
        %745 = vmatpush1.bf16.msra.mxu0 0
        %746 = vmatprep.subr.bf16.mxu0 0
        %747 = vmatpush1.bf16.msra.mxu0 0
        %748 = vmatprep.subr.bf16.mxu0 0
        %749 = vmatpush1.bf16.msra.mxu0 0
        %750 = vmatprep.subr.bf16.mxu0 0
        %751 = vmatpush1.bf16.msra.mxu0 0
        %752 = vmatprep.mubr.bf16.mxu0 0
        %753 = vmatmul.mubr.bf16.gmra.mrb[0].mxu0 %v715
        %v754 = vpop.f32.mrb[0].mxu0
        %v755 = vadd.f32 0.0, %v754
        %v756 = vpop.f32.mrb[0].mxu0
        %v757 = vpop.f32.mrb[0].mxu0
        %v758 = vadd.f32 0.0, %v757
        %v759 = vpop.f32.mrb[0].mxu0
        %760 = vmatprep.mubr.bf16.mxu0 0
        %761 = vmatmul.mubr.bf16.gmra.mrb[0].mxu0 %v718
        %v762 = vpop.f32.mrb[0].mxu0
        %v763 = vadd.f32 0.0, %v762
        %v764 = vpop.f32.mrb[0].mxu0
        %v765 = vpop.f32.mrb[0].mxu0
        %v766 = vpop.f32.mrb[0].mxu0
        %767 = vdwg.mxu0
        %768 = vxpose.xlu0.c.b16.start [1/8] %v696, 128
        %769 = vxpose.xlu0.c.b16.cont [2/8] 0, 128
        %770 = vxpose.xlu0.c.b16.cont [3/8] 0, 128
        %771 = vxpose.xlu0.c.b16.cont [4/8] 0, 128
        %772 = vxpose.xlu0.c.b16.cont [5/8] 0, 128
        %773 = vxpose.xlu0.c.b16.cont [6/8] 0, 128
        %774 = vxpose.xlu0.c.b16.cont [7/8] 0, 128
        %775 = vxpose.xlu0.c.b16.end [8/8] 0, 128
        %v776 = vpop.trf.xlu0
        %v777 = vpop.trf.xlu0
        %v778 = vpop.trf.xlu0
        %v779 = vpop.trf.xlu0
        %v780 = vpop.trf.xlu0
        %v781 = vpop.trf.xlu0
        %v782 = vpop.trf.xlu0
        %v783 = vpop.trf.xlu0
        %v785 = vsel %vm713, %v776, 0
        %v788 = vsel %vm713, %v777, 0
        %790 = vmatprep.subr.bf16.mxu0 0
        %791 = vmatpush1.bf16.msra.mxu0 %v349
        %792 = vmatprep.subr.bf16.mxu0 0
        %793 = vmatpush1.bf16.msra.mxu0 0
        %794 = vmatprep.subr.bf16.mxu0 0
        %795 = vmatpush1.bf16.msra.mxu0 0
        %796 = vmatprep.subr.bf16.mxu0 0
        %797 = vmatpush1.bf16.msra.mxu0 0
        %798 = vmatprep.subr.bf16.mxu0 0
        %799 = vmatpush1.bf16.msra.mxu0 0
        %800 = vmatprep.subr.bf16.mxu0 0
        %801 = vmatpush1.bf16.msra.mxu0 0
        %802 = vmatprep.subr.bf16.mxu0 0
        %803 = vmatpush1.bf16.msra.mxu0 0
        %804 = vmatprep.subr.bf16.mxu0 0
        %805 = vmatpush1.bf16.msra.mxu0 0
        %806 = vmatprep.subr.bf16.mxu0 0
        %807 = vmatpush1.bf16.msra.mxu0 0
        %808 = vmatprep.subr.bf16.mxu0 0
        %809 = vmatpush1.bf16.msra.mxu0 0
        %810 = vmatprep.subr.bf16.mxu0 0
        %811 = vmatpush1.bf16.msra.mxu0 0
        %812 = vmatprep.subr.bf16.mxu0 0
        %813 = vmatpush1.bf16.msra.mxu0 0
        %814 = vmatprep.subr.bf16.mxu0 0
        %815 = vmatpush1.bf16.msra.mxu0 0
        %816 = vmatprep.subr.bf16.mxu0 0
        %817 = vmatpush1.bf16.msra.mxu0 0
        %818 = vmatprep.subr.bf16.mxu0 0
        %819 = vmatpush1.bf16.msra.mxu0 0
        %820 = vmatprep.subr.bf16.mxu0 0
        %821 = vmatpush1.bf16.msra.mxu0 0
        %822 = vmatprep.mubr.bf16.mxu0 0
        %823 = vmatmul.mubr.bf16.gmra.mrb[0].mxu0 %v785
        %v824 = vpop.f32.mrb[0].mxu0
        %v825 = vadd.f32 0.0, %v824
        %v826 = vpop.f32.mrb[0].mxu0
        %v827 = vpop.f32.mrb[0].mxu0
        %v828 = vadd.f32 0.0, %v827
        %v829 = vpop.f32.mrb[0].mxu0
        %830 = vmatprep.mubr.bf16.mxu0 0
        %831 = vmatmul.mubr.bf16.gmra.mrb[0].mxu0 %v788
        %v832 = vpop.f32.mrb[0].mxu0
        %v833 = vadd.f32 0.0, %v832
        %v834 = vpop.f32.mrb[0].mxu0
        %v835 = vpop.f32.mrb[0].mxu0
        %v836 = vpop.f32.mrb[0].mxu0
        %837 = vdwg.mxu0
        %838 = vst.msk [vmem:[%s304] sm:$0xff] %vm400, %v755
        %839 = vst.msk [vmem:[%s304 + $0x8] sm:$0xff] %vm400, %v758
        %840 = vst.msk [vmem:[%s304 + $0x10] sm:$0xff] %vm400, %v763
        %841 = vst.msk [vmem:[%s304 + $0x18] sm:$0xff] %vm400, %v825
        %842 = vst.msk [vmem:[%s304 + $0x20] sm:$0xff] %vm400, %v828
        %843 = vst.msk [vmem:[%s304 + $0x28] sm:$0xff] %vm400, %v833
        %s844 = sand.u32 %s138, 1
        %s845 = scalar_lea.sflag [#allocation4], %s844
        %s846 = sand.u32 %s138, 1
        %s847 = smul.addr %s846, 32
        %s848 = scalar_lea.vmem [#allocation5], %s847
        %s849 = sand.u32 %s164, 1
        %s850 = scalar_lea.sflag [#allocation7], %s849
        %s851 = sand.u32 %s164, 1
        %s852 = smul.addr %s851, 48
        %s853 = scalar_lea.vmem [#allocation6], %s852
        // Predicated region
        $region41: #{tpu_custom_call.1} parent=35 // pred_check
          %p854 = pneg %p148
        $region42: #{tpu_custom_call.1} parent=35 // pred_check_branch
          %856 = sbr.rel (%p854) target = $region44
        $region43: #{tpu_custom_call.1} parent=35 // pred_region
          %s857 = smul.u32 2, %s26
          %s859 = ssub.s32 512, 512
          %860 = vsyncadd %s845, %s859
          %s861 = smul.addr %s857, 2
          %s862 = smul.addr %s861, 128
          %s863 = scalar_lea.hbm %s4, %s862
          %s864 = sshll.u32 %s848, 4
          %s865 = int_to_ptr.vmem [resolvable:$true] %s864
          %870 = dma.vmem_to_hbm [thread:$0]  %s865, 512, %s863, %s845, 128, 128, 8
        $region44: #{tpu_custom_call.1} parent=35 // pred_fallthru
          _
        // Predicated region
        $region45: #{tpu_custom_call.1} parent=35 // pred_check
          %p871 = pneg %p174
        $region46: #{tpu_custom_call.1} parent=35 // pred_check_branch
          %873 = sbr.rel (%p871) target = $region48
        $region47: #{tpu_custom_call.1} parent=35 // pred_region
          %s874 = smul.u32 2, %s26
          %s876 = ssub.s32 768, 768
          %877 = vsyncadd %s850, %s876
          %s878 = smul.addr %s874, 3
          %s879 = smul.addr %s878, 128
          %s880 = scalar_lea.hbm %s5, %s879
          %s881 = sshll.u32 %s853, 4
          %s882 = int_to_ptr.vmem [resolvable:$true] %s881
          %887 = dma.vmem_to_hbm [thread:$0]  %s882, 768, %s880, %s850, 128, 128, 8
        $region48: #{tpu_custom_call.1} parent=35 // pred_fallthru
          _
      $region36: #{tpu_custom_call.1} parent=5 // pred_fallthru
        _
      %p888 = scmp.le.s32.totalorder 2, %s21
      // Predicated region
      $region49: #{tpu_custom_call.1} parent=5 // pred_check
        %p889 = pneg %p888
      $region50: #{tpu_custom_call.1} parent=5 // pred_check_branch
        %891 = sbr.rel (%p889) target = $region52
      $region51: #{tpu_custom_call.1} parent=5 // pred_region
        %s892 = ssub.s32 %s21, 2
        // Predicated region
        $region53: #{tpu_custom_call.1} parent=51 // pred_check
          %p893 = pneg %p154
        $region54: #{tpu_custom_call.1} parent=51 // pred_check_branch
          %895 = sbr.rel (%p893) target = $region56
        $region55: #{tpu_custom_call.1} parent=51 // pred_region
          %s896 = sand.u32 %s139, 1
          %s897 = scalar_lea.sflag [#allocation4], %s896
          %s898 = sand.u32 %s139, 1
          %s899 = smul.addr %s898, 32
          %s900 = scalar_lea.vmem [#allocation5], %s899
          %901 = dma.done %s897, 512
        $region56: #{tpu_custom_call.1} parent=51 // pred_fallthru
          _
        // Predicated region
        $region57: #{tpu_custom_call.1} parent=51 // pred_check
          %p902 = pneg %p180
        $region58: #{tpu_custom_call.1} parent=51 // pred_check_branch
          %904 = sbr.rel (%p902) target = $region60
        $region59: #{tpu_custom_call.1} parent=51 // pred_region
          %s905 = sand.u32 %s165, 1
          %s906 = scalar_lea.sflag [#allocation7], %s905
          %s907 = sand.u32 %s165, 1
          %s908 = smul.addr %s907, 48
          %s909 = scalar_lea.vmem [#allocation6], %s908
          %910 = dma.done %s906, 768
        $region60: #{tpu_custom_call.1} parent=51 // pred_fallthru
          _
      $region52: #{tpu_custom_call.1} parent=5 // pred_fallthru
        _
    $region6: #{tpu_custom_call.1} parent=1 // loop_footer
      %s25 = sadd.s32 1, %s21
    $region7: #{tpu_custom_call.1} parent=1 // loop_footer_branch
      %20 = sbr.rel target = $region3
    $region8: #{tpu_custom_call.1} parent=1 // loop_exit
      _
    %911 = vsyncpa [#allocation3], 1
    %s912 = scalar_lea.sflag [#allocation3], 1
    %913 = vsyncpa %s912, 1
    %914 = vsyncpa [#allocation4], 1
    %s915 = scalar_lea.sflag [#allocation4], 1
    %916 = vsyncpa %s915, 1
    %917 = vsyncpa [#allocation7], 1
    %s918 = scalar_lea.sflag [#allocation7], 1
    %919 = vsyncpa %s918, 1

</llo_original>
